<compile_context>
chip_gen: v6e
topology: v6e:2x2x1
jax: 0.10.0
libtpu: 0.0.40
codegen_flags: <defaults>
</compile_context>

<pallas_src>
import functools

import jax
import jax.numpy as jnp
from jax import lax
from jax.experimental import pallas as pl
from jax.experimental.pallas import tpu as pltpu


def _round_up(x: int, m: int) -> int:
    return (x + m - 1) // m * m


def _cdiv(a: int, b: int) -> int:
    return (a + b - 1) // b


def _vmem_capacity_bytes() -> int:
    """Physical VMEM of the current TPU generation (conservative fallback)."""
    try:
        info = pltpu.get_tpu_info()
        cap = getattr(info, "vmem_capacity_bytes", None)
        if cap:
            return int(cap)
    except Exception:
        pass
    return 64 << 20  # v7x minimum; safe on every generation


# ---------------------------------------------------------------------------
# Fused kernel: both weight matrices resident in VMEM, batch dim gridded.
# ---------------------------------------------------------------------------
def _fused_mlp_kernel(x_ref, w1_ref, b1_ref, w2_ref, b2_ref, o_ref, acc_ref,
                      *, hid_chunk: int):
    hid_p = w1_ref.shape[1]
    x = x_ref[...]

    if hid_p <= hid_chunk or hid_p % hid_chunk != 0:
        # Small hidden dim: single pass, h stays in vregs.
        h = jnp.dot(x, w1_ref[...], preferred_element_type=jnp.float32)
        h = jnp.maximum(h + b1_ref[...], 0.0)
        y = jnp.dot(h.astype(jnp.bfloat16), w2_ref[...],
                    preferred_element_type=jnp.float32)
    else:
        # Large hidden dim: chunk it so the f32 h slab is only
        # (bt, hid_chunk); layer-2 partial products accumulate in VMEM.
        acc_ref[...] = jnp.zeros_like(acc_ref)
        nchunks = hid_p // hid_chunk

        def body(c, carry):
            off = pl.multiple_of(c * hid_chunk, 128)
            h = jnp.dot(x, w1_ref[:, pl.ds(off, hid_chunk)],
                        preferred_element_type=jnp.float32)
            h = jnp.maximum(h + b1_ref[:, pl.ds(off, hid_chunk)], 0.0)
            acc_ref[...] += jnp.dot(h.astype(jnp.bfloat16),
                                    w2_ref[pl.ds(off, hid_chunk), :],
                                    preferred_element_type=jnp.float32)
            return carry

        lax.fori_loop(0, nchunks, body, 0)
        y = acc_ref[...]

    y = jnp.maximum(y + b2_ref[...], 0.0)
    o_ref[...] = y.astype(o_ref.dtype)


def _fused_vmem_bytes(bt, in_p, hid_p, out_p, hid_chunk, out_bytes):
    # Pallas double-buffers every input/output by default -> count 2x even
    # for the "resident" (constant index_map) weights and biases.
    w_bytes = 2 * (in_p * hid_p + hid_p * out_p) * 2      # bf16 weights
    bias_bytes = 2 * (hid_p + out_p) * 4                  # f32 biases
    x_bytes = 2 * bt * in_p * 2                           # bf16 x tile
    o_bytes = 2 * bt * out_p * out_bytes                  # out tile
    acc_bytes = bt * out_p * 4                            # f32 scratch acc
    h_bytes = bt * min(hid_p, hid_chunk) * 4              # f32 h working slab
    return w_bytes + bias_bytes + x_bytes + o_bytes + acc_bytes + h_bytes


# ---------------------------------------------------------------------------
# Fallback kernel: generic (M, N, K)-tiled linear + bias (+ ReLU), used when
# the double-buffered weights don't fit VMEM (e.g. large layers on v7x).
# ---------------------------------------------------------------------------
def _linear_relu_kernel(x_ref, w_ref, b_ref, o_ref, acc_ref, *, apply_relu):
    @pl.when(pl.program_id(2) == 0)
    def _():
        acc_ref[...] = jnp.zeros_like(acc_ref)

    acc_ref[...] += jnp.dot(x_ref[...], w_ref[...],
                            preferred_element_type=jnp.float32)

    @pl.when(pl.program_id(2) == pl.num_programs(2) - 1)
    def _():
        y = acc_ref[...] + b_ref[...]
        if apply_relu:
            y = jnp.maximum(y, 0.0)
        o_ref[...] = y.astype(o_ref.dtype)


def _pick_tile(dim: int, prefer) -> int:
    for t in prefer:
        if dim % t == 0:
            return t
    return 128


def _tiled_linear(x, w, b, *, apply_relu, out_dtype, budget, tm):
    M, K = x.shape
    N = w.shape[1]
    tn = _pick_tile(N, (512, 256, 128))
    tk = _pick_tile(K, (512, 256, 128))
    out_bytes = jnp.dtype(out_dtype).itemsize
    est = (2 * (tm * tk + tk * tn) * 2 + 2 * tn * 4
           + 2 * tm * tn * out_bytes + tm * tn * 4)
    vmem_limit = int(min(budget, max(int(1.25 * est), 16 << 20)))
    kernel = functools.partial(_linear_relu_kernel, apply_relu=apply_relu)
    return pl.pallas_call(
        kernel,
        out_shape=jax.ShapeDtypeStruct((M, N), out_dtype),
        grid=(M // tm, N // tn, K // tk),
        in_specs=[
            pl.BlockSpec((tm, tk), lambda i, j, k: (i, k)),
            pl.BlockSpec((tk, tn), lambda i, j, k: (k, j)),
            pl.BlockSpec((1, tn), lambda i, j, k: (0, j)),
        ],
        out_specs=pl.BlockSpec((tm, tn), lambda i, j, k: (i, j)),
        scratch_shapes=[pltpu.VMEM((tm, tn), jnp.float32)],
        compiler_params=pltpu.CompilerParams(
            dimension_semantics=("parallel", "parallel", "arbitrary"),
            vmem_limit_bytes=vmem_limit,
        ),
        cost_estimate=pl.CostEstimate(
            flops=2 * M * N * K,
            transcendentals=0,
            bytes_accessed=x.size * 2 + w.size * 2 + b.size * 4
            + M * N * out_bytes),
    )(x, w, b)


# ---------------------------------------------------------------------------
# Wrapper API
# ---------------------------------------------------------------------------
def prepare_mlp_params(w1, b1, w2, b2):
    """Pad feature dims to multiples of 128 and cast weights to bf16, ONCE.

    w1: [in, hid], b1: [hid], w2: [hid, out], b2: [out]
    (weights transposed from nn.Linear's [out, in] layout).
    Call once and reuse the result across forward calls.
    """
    in_dim, hid_dim = w1.shape
    out_dim = w2.shape[1]
    in_p, hid_p, out_p = (_round_up(d, 128) for d in (in_dim, hid_dim, out_dim))

    w1p = jnp.zeros((in_p, hid_p), jnp.bfloat16).at[:in_dim, :hid_dim].set(
        w1.astype(jnp.bfloat16))
    w2p = jnp.zeros((hid_p, out_p), jnp.bfloat16).at[:hid_dim, :out_dim].set(
        w2.astype(jnp.bfloat16))
    b1p = jnp.zeros((1, hid_p), jnp.float32).at[:, :hid_dim].set(
        b1.reshape(1, -1).astype(jnp.float32))
    b2p = jnp.zeros((1, out_p), jnp.float32).at[:, :out_dim].set(
        b2.reshape(1, -1).astype(jnp.float32))
    dims = dict(in_dim=in_dim, hid_dim=hid_dim, out_dim=out_dim,
                in_p=in_p, hid_p=hid_p, out_p=out_p)
    return dict(w1=w1p, b1=b1p, w2=w2p, b2=b2p, dims=dims)


def mlp_forward(x, params, *, batch_tile: int = 512, hid_chunk: int = 512):
    """x: [B, in_dim] -> ReLU(ReLU(x @ W1 + b1) @ W2 + b2): [B, out_dim]."""
    dims = params["dims"]
    in_dim, out_dim = dims["in_dim"], dims["out_dim"]
    in_p, hid_p, out_p = dims["in_p"], dims["hid_p"], dims["out_p"]
    w1p, b1p, w2p, b2p = params["w1"], params["b1"], params["w2"], params["b2"]

    out_dtype = x.dtype
    out_bytes = jnp.dtype(out_dtype).itemsize
    B = x.shape[0]
    cap = _vmem_capacity_bytes()
    budget = int(cap * 0.9)

    # Resident bf16 weights are double-buffered by Pallas -> 2x.
    weight_resident_bytes = 2 * (in_p * hid_p + hid_p * out_p) * 2
    use_fused = weight_resident_bytes <= int(0.7 * cap)

    if use_fused:
        # ---- batch tile selection (multiple of 16 for dense bf16 packing) --
        B16 = _round_up(B, 16)
        bt = min(_round_up(batch_tile, 16), B16)
        if B16 >= 32:
            # Keep >= 2 grid steps so v7x's two TensorCores both get work.
            bt = min(bt, _round_up(_cdiv(B16, 2), 16))
        while bt > 16 and _fused_vmem_bytes(bt, in_p, hid_p, out_p,
                                            hid_chunk, out_bytes) > budget:
            bt = _round_up(bt // 2, 16)
        bt = max(bt, 16)
        est = _fused_vmem_bytes(bt, in_p, hid_p, out_p, hid_chunk, out_bytes)
        if est > budget:
            use_fused = False  # even the minimal tile plan doesn't fit

    if use_fused:
        B_p = _round_up(B, bt)
        if B_p == B and in_p == in_dim:
            xp = x.astype(jnp.bfloat16)          # no pad needed
        else:
            xp = jnp.zeros((B_p, in_p), jnp.bfloat16).at[:B, :in_dim].set(
                x.astype(jnp.bfloat16))

        vmem_limit = int(min(budget, max(int(1.25 * est), 16 << 20)))
        flops = 2 * B_p * (in_p * hid_p + hid_p * out_p)
        bytes_accessed = (xp.size * 2 + w1p.size * 2 + w2p.size * 2
                          + b1p.size * 4 + b2p.size * 4
                          + B_p * out_p * out_bytes)

        kernel = functools.partial(_fused_mlp_kernel, hid_chunk=hid_chunk)
        padded_out = pl.pallas_call(
            kernel,
            out_shape=jax.ShapeDtypeStruct((B_p, out_p), out_dtype),
            grid=(B_p // bt,),
            in_specs=[
                pl.BlockSpec((bt, in_p), lambda i: (i, 0)),      # streamed x
                pl.BlockSpec((in_p, hid_p), lambda i: (0, 0)),   # resident W1
                pl.BlockSpec((1, hid_p), lambda i: (0, 0)),      # resident b1
                pl.BlockSpec((hid_p, out_p), lambda i: (0, 0)),  # resident W2
                pl.BlockSpec((1, out_p), lambda i: (0, 0)),      # resident b2
            ],
            out_specs=pl.BlockSpec((bt, out_p), lambda i: (i, 0)),
            scratch_shapes=[pltpu.VMEM((bt, out_p), jnp.float32)],
            compiler_params=pltpu.CompilerParams(
                dimension_semantics=("parallel",),
                vmem_limit_bytes=vmem_limit,
            ),
            cost_estimate=pl.CostEstimate(
                flops=flops, transcendentals=0,
                bytes_accessed=bytes_accessed),
        )(xp, w1p, b1p, w2p, b2p)

        if B_p == B and out_p == out_dim:
            return padded_out
        return padded_out[:B, :out_dim]

    # ---- fallback: weight-tiled two-pass path (weights too big for VMEM) ---
    # TODO(synk): optional fp8 weight storage on v7x for further VMEM savings.
    tm = min(256, _round_up(B, 16))
    B_p = _round_up(B, tm)
    if B_p == B and in_p == in_dim:
        xp = x.astype(jnp.bfloat16)
    else:
        xp = jnp.zeros((B_p, in_p), jnp.bfloat16).at[:B, :in_dim].set(
            x.astype(jnp.bfloat16))
    h = _tiled_linear(xp, w1p, b1p, apply_relu=True, out_dtype=jnp.bfloat16,
                      budget=budget, tm=tm)
    y = _tiled_linear(h, w2p, b2p, apply_relu=True, out_dtype=out_dtype,
                      budget=budget, tm=tm)
    if B_p == B and out_p == out_dim:
        return y
    return y[:B, :out_dim]


if __name__ == "__main__":
    # Small shapes consistent with the module's forward.
    batch, input_dim, hidden_dim, output_dim = 8, 32, 64, 16

    key = jax.random.PRNGKey(0)
    kx, kw1, kb1, kw2, kb2 = jax.random.split(key, 5)

    x = jax.random.normal(kx, (batch, input_dim), dtype=jnp.float32)

    # PyTorch-like uniform(-1/sqrt(fan_in), 1/sqrt(fan_in)) init; weights are
    # stored [in, out] (transposed from nn.Linear's [out, in]).
    lim1 = 1.0 / jnp.sqrt(jnp.float32(input_dim))
    lim2 = 1.0 / jnp.sqrt(jnp.float32(hidden_dim))
    w1 = jax.random.uniform(kw1, (input_dim, hidden_dim), jnp.float32, -lim1, lim1)
    b1 = jax.random.uniform(kb1, (hidden_dim,), jnp.float32, -lim1, lim1)
    w2 = jax.random.uniform(kw2, (hidden_dim, output_dim), jnp.float32, -lim2, lim2)
    b2 = jax.random.uniform(kb2, (output_dim,), jnp.float32, -lim2, lim2)

    params = prepare_mlp_params(w1, b1, w2, b2)   # pad + cast once, reuse
    out = mlp_forward(x, params)
    jax.block_until_ready(out)

    # Reference in plain f32 JAX.  The kernel uses bf16 MXU operands with f32
    # accumulation (documented numerics decision), so allow bf16-level
    # operand-rounding error.
    ref = jnp.maximum(jnp.maximum(x @ w1 + b1, 0.0) @ w2 + b2, 0.0)
    assert out.shape == (batch, output_dim)
    assert bool(jnp.allclose(out, ref, atol=2e-2, rtol=2e-2)), (
        float(jnp.max(jnp.abs(out - ref))))

    print("KERNEL_OK")
</pallas_src>

<mosaic_0001>
module attributes {stable_mosaic.version = 11 : i64} {
  func.func @_fused_mlp_kernel(%arg0: i32, %arg1: memref<16x128xbf16, #tpu.memory_space<vmem>>, %arg2: memref<128x128xbf16, #tpu.memory_space<vmem>>, %arg3: memref<1x128xf32, #tpu.memory_space<vmem>>, %arg4: memref<128x128xbf16, #tpu.memory_space<vmem>>, %arg5: memref<1x128xf32, #tpu.memory_space<vmem>>, %arg6: memref<16x128xf32, #tpu.memory_space<vmem>>, %arg7: memref<16x128xf32, #tpu.memory_space<vmem>>) attributes {dimension_semantics = [#tpu.dimension_semantics<parallel>], iteration_bounds = array<i64: 1>, scalar_prefetch = 0 : i64, scratch_operands = 1 : i64, tpu.core_type = #tpu.core_type<tc>, window_params = [{transform_indices = @transform_0, window_bounds = array<i64: 16, 128>}, {pipeline_mode = #tpu.pipeline_mode<synchronous>, transform_indices = @transform_1, window_bounds = array<i64: 128, 128>}, {pipeline_mode = #tpu.pipeline_mode<synchronous>, transform_indices = @transform_2, window_bounds = array<i64: 1, 128>}, {pipeline_mode = #tpu.pipeline_mode<synchronous>, transform_indices = @transform_3, window_bounds = array<i64: 128, 128>}, {pipeline_mode = #tpu.pipeline_mode<synchronous>, transform_indices = @transform_4, window_bounds = array<i64: 1, 128>}, {transform_indices = @transform_5, window_bounds = array<i64: 16, 128>}]} {
    %c0 = arith.constant 0 : index
    %c0_0 = arith.constant 0 : index
    %0 = vector.load %arg1[%c0, %c0_0] : memref<16x128xbf16, #tpu.memory_space<vmem>>, vector<16x128xbf16>
    %c0_1 = arith.constant 0 : index
    %c0_2 = arith.constant 0 : index
    %1 = vector.load %arg2[%c0_1, %c0_2] : memref<128x128xbf16, #tpu.memory_space<vmem>>, vector<128x128xbf16>
    %cst = arith.constant dense<0.000000e+00> : vector<16x128xf32>
    %2 = tpu.matmul %0, %1, %cst {dimension_numbers = #tpu.dot_dimension_numbers<[1], [0], [0], [1], [0, 0, 1, 1], [], []>} : vector<16x128xbf16>, vector<128x128xbf16>, vector<16x128xf32> -> vector<16x128xf32>
    %c0_3 = arith.constant 0 : index
    %c0_4 = arith.constant 0 : index
    %3 = vector.load %arg3[%c0_3, %c0_4] : memref<1x128xf32, #tpu.memory_space<vmem>>, vector<1x128xf32>
    %4 = vector.broadcast %3 : vector<1x128xf32> to vector<16x128xf32>
    %5 = arith.addf %2, %4 : vector<16x128xf32>
    %cst_5 = arith.constant 0.000000e+00 : f32
    %6 = vector.broadcast %cst_5 : f32 to vector<16x128xf32>
    %7 = arith.maximumf %5, %6 : vector<16x128xf32>
    %8 = arith.truncf %7 : vector<16x128xf32> to vector<16x128xbf16>
    %c0_6 = arith.constant 0 : index
    %c0_7 = arith.constant 0 : index
    %9 = vector.load %arg4[%c0_6, %c0_7] : memref<128x128xbf16, #tpu.memory_space<vmem>>, vector<128x128xbf16>
    %cst_8 = arith.constant dense<0.000000e+00> : vector<16x128xf32>
    %10 = tpu.matmul %8, %9, %cst_8 {dimension_numbers = #tpu.dot_dimension_numbers<[1], [0], [0], [1], [0, 0, 1, 1], [], []>} : vector<16x128xbf16>, vector<128x128xbf16>, vector<16x128xf32> -> vector<16x128xf32>
    %c0_9 = arith.constant 0 : index
    %c0_10 = arith.constant 0 : index
    %11 = vector.load %arg5[%c0_9, %c0_10] : memref<1x128xf32, #tpu.memory_space<vmem>>, vector<1x128xf32>
    %12 = vector.broadcast %11 : vector<1x128xf32> to vector<16x128xf32>
    %13 = arith.addf %10, %12 : vector<16x128xf32>
    %cst_11 = arith.constant 0.000000e+00 : f32
    %14 = vector.broadcast %cst_11 : f32 to vector<16x128xf32>
    %15 = arith.maximumf %13, %14 : vector<16x128xf32>
    %c0_12 = arith.constant 0 : index
    %c0_13 = arith.constant 0 : index
    %16 = vector.load %arg6[%c0_12, %c0_13] : memref<16x128xf32, #tpu.memory_space<vmem>>, vector<16x128xf32>
    tpu.vector_store %arg6[%c0_12, %c0_13], %15 {strides = array<i32>} : memref<16x128xf32, #tpu.memory_space<vmem>>, vector<16x128xf32>,
    return
  }
  func.func @transform_0(%arg0: i32) -> (i32, i32) {
    %c0_i32 = arith.constant 0 : i32
    %c0_i32_0 = arith.constant 0 : i32
    return %arg0, %c0_i32 : i32, i32
  }
  func.func @transform_1(%arg0: i32) -> (i32, i32) {
    %c0_i32 = arith.constant 0 : i32
    %c0_i32_0 = arith.constant 0 : i32
    %c0_i32_1 = arith.constant 0 : i32
    return %c0_i32, %c0_i32_0 : i32, i32
  }
  func.func @transform_2(%arg0: i32) -> (i32, i32) {
    %c0_i32 = arith.constant 0 : i32
    %c0_i32_0 = arith.constant 0 : i32
    %c0_i32_1 = arith.constant 0 : i32
    return %c0_i32, %c0_i32_0 : i32, i32
  }
  func.func @transform_3(%arg0: i32) -> (i32, i32) {
    %c0_i32 = arith.constant 0 : i32
    %c0_i32_0 = arith.constant 0 : i32
    %c0_i32_1 = arith.constant 0 : i32
    return %c0_i32, %c0_i32_0 : i32, i32
  }
  func.func @transform_4(%arg0: i32) -> (i32, i32) {
    %c0_i32 = arith.constant 0 : i32
    %c0_i32_0 = arith.constant 0 : i32
    %c0_i32_1 = arith.constant 0 : i32
    return %c0_i32, %c0_i32_0 : i32, i32
  }
  func.func @transform_5(%arg0: i32) -> (i32, i32) {
    %c0_i32 = arith.constant 0 : i32
    %c0_i32_0 = arith.constant 0 : i32
    return %arg0, %c0_i32 : i32, i32
  }
}

</mosaic_0001>

<llo_original>
// kernel: tpu_custom_call.1
$region0: #{tpu_custom_call.1}
  #allocation0 [shape = 'u32[]', space=smem, size = 0x4, offset = 0x4, fixed_abs, tag = 'smem constant byte address 0x4 - core index']
  #allocation1 [shape = 'u32[144,128]{1,0:T(1,128)}', space=vmem, size = 0x12000, scoped, tag = 'internal scratch']
  #allocation2 [shape = 'f32[16,128]{1,0:T(8,128)}', space=vmem, size = 0x2000, scoped, tag = 'scratch operand']
  %s0 = inlined_call_operand.hbm [shape: bf16[16,128], index: 0, kind: input, shape index: {}]
  %s1 = inlined_call_operand.hbm [shape: bf16[128,128], index: 1, kind: input, shape index: {}]
  %s2 = inlined_call_operand.vmem [shape: f32[1,128], index: 2, kind: input, shape index: {}]
  %s3 = inlined_call_operand.hbm [shape: bf16[128,128], index: 3, kind: input, shape index: {}]
  %s4 = inlined_call_operand.vmem [shape: f32[1,128], index: 4, kind: input, shape index: {}]
  %s5 = inlined_call_operand.hbm [shape: f32[16,128], index: 5, kind: output, shape index: {}]
  %s6 = sld [smem:[#allocation0]]
  $region42: #{tpu_custom_call.1} parent=0
    _
  %s8 = ssub.s32 1, %s6
  %s9 = scalar_select 0, %s8, %s6
  $region1: #{tpu_custom_call.1} parent=0
    #allocation3 [shape = 'u8[4096]{0}', space=vmem, size = 0x1000, scoped, tag = 'input window, operand 0, single buffered']
    #allocation4 [shape = 's32[1]{0}', space=sflag, size = 0x4, scoped, tag = 'scoped memory for tpu_custom_call.1']
    #allocation5 [shape = 's32[1]{0}', space=sflag, size = 0x4, scoped, tag = 'scoped memory for tpu_custom_call.1']
    #allocation6 [shape = 'u8[32768]{0}', space=vmem, size = 0x8000, scoped, tag = 'input window, operand 1, single buffered']
    #allocation7 [shape = 's32[1]{0}', space=sflag, size = 0x4, scoped, tag = 'scoped memory for tpu_custom_call.1']
    #allocation8 [shape = 'u8[32768]{0}', space=vmem, size = 0x8000, scoped, tag = 'input window, operand 3, single buffered']
    #allocation9 [shape = 'u8[8192]{0}', space=vmem, size = 0x2000, scoped, tag = 'output window, operand 0, single buffered']
    %10 = vsyncpa [#allocation4], 0
    %11 = vsyncpa [#allocation7], 0
    %12 = vsyncpa [#allocation5], 0
    // Predicated region
    $region2: #{tpu_custom_call.1} parent=1 // pred_check
      _
    $region3: #{tpu_custom_call.1} parent=1 // pred_check_branch
      %14 = sbr.rel (0) target = $region5
    $region4: #{tpu_custom_call.1} parent=1 // pred_region
      %s16 = ssub.s32 128, 128
      %17 = vsyncadd [#allocation4], %s16
      %s18 = sshll.u32 [#allocation3], 4
      %s19 = int_to_ptr.vmem [resolvable:$true] %s18
      %24 = dma.hbm_to_vmem [thread:$0]  %s0, 128, %s19, [#allocation4], 64, 64, 4
    $region5: #{tpu_custom_call.1} parent=1 // pred_fallthru
      _
    // Predicated region
    $region6: #{tpu_custom_call.1} parent=1 // pred_check
      _
    $region7: #{tpu_custom_call.1} parent=1 // pred_check_branch
      %26 = sbr.rel (0) target = $region9
    $region8: #{tpu_custom_call.1} parent=1 // pred_region
      %s28 = ssub.s32 1024, 1024
      %29 = vsyncadd [#allocation7], %s28
      %s30 = sshll.u32 [#allocation6], 4
      %s31 = int_to_ptr.vmem [resolvable:$true] %s30
      %36 = dma.hbm_to_vmem [thread:$0]  %s1, 1024, %s31, [#allocation7], 64, 64, 4
    $region9: #{tpu_custom_call.1} parent=1 // pred_fallthru
      _
    // Predicated region
    $region10: #{tpu_custom_call.1} parent=1 // pred_check
      _
    $region11: #{tpu_custom_call.1} parent=1 // pred_check_branch
      %38 = sbr.rel (0) target = $region13
    $region12: #{tpu_custom_call.1} parent=1 // pred_region
      _
    $region13: #{tpu_custom_call.1} parent=1 // pred_fallthru
      _
    // Predicated region
    $region14: #{tpu_custom_call.1} parent=1 // pred_check
      _
    $region15: #{tpu_custom_call.1} parent=1 // pred_check_branch
      %40 = sbr.rel (0) target = $region17
    $region16: #{tpu_custom_call.1} parent=1 // pred_region
      %s42 = ssub.s32 1024, 1024
      %43 = vsyncadd [#allocation7], %s42
      %s44 = sshll.u32 [#allocation8], 4
      %s45 = int_to_ptr.vmem [resolvable:$true] %s44
      %50 = dma.hbm_to_vmem [thread:$0]  %s3, 1024, %s45, [#allocation7], 64, 64, 4
    $region17: #{tpu_custom_call.1} parent=1 // pred_fallthru
      _
    // Predicated region
    $region18: #{tpu_custom_call.1} parent=1 // pred_check
      _
    $region19: #{tpu_custom_call.1} parent=1 // pred_check_branch
      %52 = sbr.rel (0) target = $region21
    $region20: #{tpu_custom_call.1} parent=1 // pred_region
      _
    $region21: #{tpu_custom_call.1} parent=1 // pred_fallthru
      _
    // Predicated region
    $region22: #{tpu_custom_call.1} parent=1 // pred_check
      _
    $region23: #{tpu_custom_call.1} parent=1 // pred_check_branch
      %54 = sbr.rel (0) target = $region25
    $region24: #{tpu_custom_call.1} parent=1 // pred_region
      %55 = dma.done [#allocation4], 128
    $region25: #{tpu_custom_call.1} parent=1 // pred_fallthru
      _
    // Predicated region
    $region26: #{tpu_custom_call.1} parent=1 // pred_check
      _
    $region27: #{tpu_custom_call.1} parent=1 // pred_check_branch
      %57 = sbr.rel (0) target = $region29
    $region28: #{tpu_custom_call.1} parent=1 // pred_region
      %58 = dma.done [#allocation7], 1024
    $region29: #{tpu_custom_call.1} parent=1 // pred_fallthru
      _
    // Predicated region
    $region30: #{tpu_custom_call.1} parent=1 // pred_check
      _
    $region31: #{tpu_custom_call.1} parent=1 // pred_check_branch
      %60 = sbr.rel (0) target = $region33
    $region32: #{tpu_custom_call.1} parent=1 // pred_region
      %61 = dma.done [#allocation7], 1024
    $region33: #{tpu_custom_call.1} parent=1 // pred_fallthru
      _
    %v63 = vld [vmem:[#allocation3] sm:$0xf]
    %v64 = vld [vmem:[#allocation3 + $0x4] sm:$0xf]
    %v65 = vld [vmem:[#allocation6] sm:$0xf]
    %v66 = vld [vmem:[#allocation6 + $0x4] sm:$0xf]
    %v67 = vld [vmem:[#allocation6 + $0x8] sm:$0xf]
    %v68 = vld [vmem:[#allocation6 + $0xc] sm:$0xf]
    %v69 = vld [vmem:[#allocation6 + $0x10] sm:$0xf]
    %v70 = vld [vmem:[#allocation6 + $0x14] sm:$0xf]
    %v71 = vld [vmem:[#allocation6 + $0x18] sm:$0xf]
    %v72 = vld [vmem:[#allocation6 + $0x1c] sm:$0xf]
    %v73 = vld [vmem:[#allocation6 + $0x20] sm:$0xf]
    %v74 = vld [vmem:[#allocation6 + $0x24] sm:$0xf]
    %v75 = vld [vmem:[#allocation6 + $0x28] sm:$0xf]
    %v76 = vld [vmem:[#allocation6 + $0x2c] sm:$0xf]
    %v77 = vld [vmem:[#allocation6 + $0x30] sm:$0xf]
    %v78 = vld [vmem:[#allocation6 + $0x34] sm:$0xf]
    %v79 = vld [vmem:[#allocation6 + $0x38] sm:$0xf]
    %v80 = vld [vmem:[#allocation6 + $0x3c] sm:$0xf]
    %v81 = vld [vmem:[%s2] sm:$0x1]
    %v83 = vlaneseq
    %v84 = vshrl.u32 %v83, 7
    %v85 = vsub.s32 0, %v84
    %v86 = vrot.slane %v81, %v85
    %v90 = vunpack.c.l.b16 %v63
    %v91 = vunpack.c.l.b16 %v64
    %v92 = vpack.c.b16 %v91, %v90
    %v110 = vunpack.c.l.b16 %v65
    %v111 = vunpack.c.l.b16 %v66
    %v112 = vunpack.c.l.b16 %v67
    %v113 = vunpack.c.l.b16 %v68
    %v114 = vunpack.c.l.b16 %v69
    %v115 = vunpack.c.l.b16 %v70
    %v116 = vunpack.c.l.b16 %v71
    %v117 = vunpack.c.l.b16 %v72
    %v118 = vunpack.c.l.b16 %v73
    %v119 = vunpack.c.l.b16 %v74
    %v120 = vunpack.c.l.b16 %v75
    %v121 = vunpack.c.l.b16 %v76
    %v122 = vunpack.c.l.b16 %v77
    %v123 = vunpack.c.l.b16 %v78
    %v124 = vunpack.c.l.b16 %v79
    %v125 = vunpack.c.l.b16 %v80
    %v126 = vpack.c.b16 %v111, %v110
    %v127 = vpack.c.b16 %v113, %v112
    %v128 = vpack.c.b16 %v115, %v114
    %v129 = vpack.c.b16 %v117, %v116
    %v130 = vpack.c.b16 %v119, %v118
    %v131 = vpack.c.b16 %v121, %v120
    %v132 = vpack.c.b16 %v123, %v122
    %v133 = vpack.c.b16 %v125, %v124
    %142 = vmatprep.subr.bf16.mxu0 0
    %143 = vmatpush1.bf16.msra.mxu0 %v133
    %144 = vmatprep.subr.bf16.mxu0 0
    %145 = vmatpush1.bf16.msra.mxu0 %v132
    %146 = vmatprep.subr.bf16.mxu0 0
    %147 = vmatpush1.bf16.msra.mxu0 %v131
    %148 = vmatprep.subr.bf16.mxu0 0
    %149 = vmatpush1.bf16.msra.mxu0 %v130
    %150 = vmatprep.subr.bf16.mxu0 0
    %151 = vmatpush1.bf16.msra.mxu0 %v129
    %152 = vmatprep.subr.bf16.mxu0 0
    %153 = vmatpush1.bf16.msra.mxu0 %v128
    %154 = vmatprep.subr.bf16.mxu0 0
    %155 = vmatpush1.bf16.msra.mxu0 %v127
    %156 = vmatprep.subr.bf16.mxu0 0
    %157 = vmatpush1.bf16.msra.mxu0 %v126
    %158 = vmatprep.subr.bf16.mxu0 0
    %159 = vmatpush2.bf16.msra.mxu0 0
    %160 = vmatprep.subr.bf16.mxu0 0
    %161 = vmatpush2.bf16.msra.mxu0 0
    %162 = vmatprep.subr.bf16.mxu0 0
    %163 = vmatpush2.bf16.msra.mxu0 0
    %164 = vmatprep.subr.bf16.mxu0 0
    %165 = vmatpush2.bf16.msra.mxu0 0
    %166 = vmatprep.subr.bf16.mxu0 0
    %167 = vmatpush2.bf16.msra.mxu0 0
    %168 = vmatprep.subr.bf16.mxu0 0
    %169 = vmatpush2.bf16.msra.mxu0 0
    %170 = vmatprep.subr.bf16.mxu0 0
    %171 = vmatpush2.bf16.msra.mxu0 0
    %172 = vmatprep.subr.bf16.mxu0 0
    %173 = vmatpush2.bf16.msra.mxu0 0
    %174 = vmatprep.mubr.bf16.mxu0 0
    %175 = vmatmul.mubr.bf16.gmra.mxu0 %v92
    %v176 = vpop.f32.mrf.mxu0
    %v177 = vadd.f32 %v86, %v176
    %v178 = vpop.f32.mrf.mxu0
    %v179 = vpop.f32.mrf.mxu0
    %v180 = vadd.f32 %v86, %v179
    %v181 = vpop.f32.mrf.mxu0
    %182 = vdwg.mxu0
    %v183 = vmax.f32 %v177, 0.0
    %v184 = vmax.f32 %v180, 0.0
    %v185 = vpack.c.bf16 %v184, %v183
    %v186 = vld [vmem:[#allocation8] sm:$0xf]
    %v187 = vld [vmem:[#allocation8 + $0x4] sm:$0xf]
    %v188 = vld [vmem:[#allocation8 + $0x8] sm:$0xf]
    %v189 = vld [vmem:[#allocation8 + $0xc] sm:$0xf]
    %v190 = vld [vmem:[#allocation8 + $0x10] sm:$0xf]
    %v191 = vld [vmem:[#allocation8 + $0x14] sm:$0xf]
    %v192 = vld [vmem:[#allocation8 + $0x18] sm:$0xf]
    %v193 = vld [vmem:[#allocation8 + $0x1c] sm:$0xf]
    %v194 = vld [vmem:[#allocation8 + $0x20] sm:$0xf]
    %v195 = vld [vmem:[#allocation8 + $0x24] sm:$0xf]
    %v196 = vld [vmem:[#allocation8 + $0x28] sm:$0xf]
    %v197 = vld [vmem:[#allocation8 + $0x2c] sm:$0xf]
    %v198 = vld [vmem:[#allocation8 + $0x30] sm:$0xf]
    %v199 = vld [vmem:[#allocation8 + $0x34] sm:$0xf]
    %v200 = vld [vmem:[#allocation8 + $0x38] sm:$0xf]
    %v201 = vld [vmem:[#allocation8 + $0x3c] sm:$0xf]
    %v202 = vld [vmem:[%s4] sm:$0x1]
    %v204 = vlaneseq
    %v205 = vshrl.u32 %v204, 7
    %v206 = vsub.s32 0, %v205
    %v207 = vrot.slane %v202, %v206
    %v225 = vunpack.c.l.b16 %v186
    %v226 = vunpack.c.l.b16 %v187
    %v227 = vunpack.c.l.b16 %v188
    %v228 = vunpack.c.l.b16 %v189
    %v229 = vunpack.c.l.b16 %v190
    %v230 = vunpack.c.l.b16 %v191
    %v231 = vunpack.c.l.b16 %v192
    %v232 = vunpack.c.l.b16 %v193
    %v233 = vunpack.c.l.b16 %v194
    %v234 = vunpack.c.l.b16 %v195
    %v235 = vunpack.c.l.b16 %v196
    %v236 = vunpack.c.l.b16 %v197
    %v237 = vunpack.c.l.b16 %v198
    %v238 = vunpack.c.l.b16 %v199
    %v239 = vunpack.c.l.b16 %v200
    %v240 = vunpack.c.l.b16 %v201
    %v241 = vpack.c.b16 %v226, %v225
    %v242 = vpack.c.b16 %v228, %v227
    %v243 = vpack.c.b16 %v230, %v229
    %v244 = vpack.c.b16 %v232, %v231
    %v245 = vpack.c.b16 %v234, %v233
    %v246 = vpack.c.b16 %v236, %v235
    %v247 = vpack.c.b16 %v238, %v237
    %v248 = vpack.c.b16 %v240, %v239
    %257 = vmatprep.subr.bf16.mxu0 0
    %258 = vmatpush1.bf16.msra.mxu0 %v248
    %259 = vmatprep.subr.bf16.mxu0 0
    %260 = vmatpush1.bf16.msra.mxu0 %v247
    %261 = vmatprep.subr.bf16.mxu0 0
    %262 = vmatpush1.bf16.msra.mxu0 %v246
    %263 = vmatprep.subr.bf16.mxu0 0
    %264 = vmatpush1.bf16.msra.mxu0 %v245
    %265 = vmatprep.subr.bf16.mxu0 0
    %266 = vmatpush1.bf16.msra.mxu0 %v244
    %267 = vmatprep.subr.bf16.mxu0 0
    %268 = vmatpush1.bf16.msra.mxu0 %v243
    %269 = vmatprep.subr.bf16.mxu0 0
    %270 = vmatpush1.bf16.msra.mxu0 %v242
    %271 = vmatprep.subr.bf16.mxu0 0
    %272 = vmatpush1.bf16.msra.mxu0 %v241
    %273 = vmatprep.subr.bf16.mxu0 0
    %274 = vmatpush2.bf16.msra.mxu0 0
    %275 = vmatprep.subr.bf16.mxu0 0
    %276 = vmatpush2.bf16.msra.mxu0 0
    %277 = vmatprep.subr.bf16.mxu0 0
    %278 = vmatpush2.bf16.msra.mxu0 0
    %279 = vmatprep.subr.bf16.mxu0 0
    %280 = vmatpush2.bf16.msra.mxu0 0
    %281 = vmatprep.subr.bf16.mxu0 0
    %282 = vmatpush2.bf16.msra.mxu0 0
    %283 = vmatprep.subr.bf16.mxu0 0
    %284 = vmatpush2.bf16.msra.mxu0 0
    %285 = vmatprep.subr.bf16.mxu0 0
    %286 = vmatpush2.bf16.msra.mxu0 0
    %287 = vmatprep.subr.bf16.mxu0 0
    %288 = vmatpush2.bf16.msra.mxu0 0
    %289 = vmatprep.mubr.bf16.mxu0 0
    %290 = vmatmul.mubr.bf16.gmra.mxu0 %v185
    %v291 = vpop.f32.mrf.mxu0
    %v292 = vadd.f32 %v207, %v291
    %v293 = vpop.f32.mrf.mxu0
    %v294 = vpop.f32.mrf.mxu0
    %v295 = vadd.f32 %v207, %v294
    %v296 = vpop.f32.mrf.mxu0
    %297 = vdwg.mxu0
    %v298 = vmax.f32 %v292, 0.0
    %v299 = vmax.f32 %v295, 0.0
    %300 = vst [vmem:[#allocation9] sm:$0xff] %v298
    %301 = vst [vmem:[#allocation9 + $0x8] sm:$0xff] %v299
    // Predicated region
    $region34: #{tpu_custom_call.1} parent=1 // pred_check
      _
    $region35: #{tpu_custom_call.1} parent=1 // pred_check_branch
      %303 = sbr.rel (0) target = $region37
    $region36: #{tpu_custom_call.1} parent=1 // pred_region
      %s305 = ssub.s32 256, 256
      %306 = vsyncadd [#allocation5], %s305
      %s307 = sshll.u32 [#allocation9], 4
      %s308 = int_to_ptr.vmem [resolvable:$true] %s307
      %313 = dma.vmem_to_hbm [thread:$0]  %s308, 256, %s5, [#allocation5], 128, 128, 8
    $region37: #{tpu_custom_call.1} parent=1 // pred_fallthru
      _
    // Predicated region
    $region38: #{tpu_custom_call.1} parent=1 // pred_check
      _
    $region39: #{tpu_custom_call.1} parent=1 // pred_check_branch
      %315 = sbr.rel (0) target = $region41
    $region40: #{tpu_custom_call.1} parent=1 // pred_region
      %316 = dma.done [#allocation5], 256
    $region41: #{tpu_custom_call.1} parent=1 // pred_fallthru
      _
    %317 = vsyncpa [#allocation4], 1
    %318 = vsyncpa [#allocation7], 1
    %319 = vsyncpa [#allocation5], 1

</llo_original>
